<compile_context>
chip_gen: v7x
topology: tpu7x:2x2x1
jax: 0.10.0
libtpu: 0.0.40
codegen_flags: <defaults>
</compile_context>

<pallas_src>
import functools

import jax
import jax.numpy as jnp
from jax.experimental import pallas as pl
from jax.experimental.pallas import tpu as pltpu


def _round_up(x, m):
    return ((x + m - 1) // m) * m


# --------------------------------------------------------------------------
# Fused MLP kernel: whole network for one batch tile.
# --------------------------------------------------------------------------
def _fused_mlp_kernel(x_ref, *refs, num_layers, compute_dtype):
    """x_ref: [TM, F0] batch tile.  refs: w0, b0, w1, b1, ..., o_ref.

    Weights are already stored in compute_dtype (no per-step cast); biases are
    f32 with shape (1, f_out).  Matmul inputs go to the MXU in compute_dtype,
    accumulation / bias-add / tanh are f32 (VPU + EUP).
    """
    o_ref = refs[-1]
    wb = refs[:-1]

    h = x_ref[...]
    for layer in range(num_layers):
        w = wb[2 * layer][...]
        b = wb[2 * layer + 1][...]
        y = jnp.dot(h.astype(compute_dtype), w,
                    preferred_element_type=jnp.float32)
        y = y + b
        if layer < num_layers - 1:
            y = jnp.tanh(y)
        h = y
    o_ref[...] = h.astype(o_ref.dtype)


def _resident_spec(shape):
    """Constant-index-map spec: the array stays VMEM-resident across every
    batch-tile grid step, so it only needs a single buffer."""
    try:
        return pl.BlockSpec(shape, lambda i: (0, 0),
                            pipeline_mode=pl.Buffered(1))
    except TypeError:  # older jax without pipeline_mode on BlockSpec
        return pl.BlockSpec(shape, lambda i: (0, 0))


def _vmem_estimate_bytes(tm, f0, padded_params, io_itemsize):
    """Rough per-core VMEM need: double-buffered X/Y tiles + resident params
    + f32 intermediates (with slack)."""
    f_out = padded_params[-1][0].shape[1]
    est = 2 * tm * f0 * io_itemsize          # double-buffered input tile
    est += 2 * tm * f_out * io_itemsize      # double-buffered output tile
    for w, b in padded_params:
        est += w.size * w.dtype.itemsize + b.size * b.dtype.itemsize
    max_w = max([f0] + [w.shape[1] for w, _ in padded_params])
    est += 4 * tm * max_w * 4                # f32 intermediates + headroom
    return int(est)


_VMEM_TILE_BUDGET = 40 * 1024 * 1024   # conservative vs. v7x's 64 MiB physical


def _choose_tile(batch, tile_m, f0, padded_params, io_itemsize):
    """Pick the batch-tile size: multiple of 8, >=2 grid steps when possible
    (v7x megacore + DMA overlap), capped against the VMEM budget."""
    b8 = _round_up(max(batch, 1), 8)
    tile_m = max(8, _round_up(tile_m, 8))
    if b8 <= tile_m:
        # Whole batch fits in one tile: split into 2 steps unless tiny so the
        # second TensorCore (v7x) and the X/Y DMA pipeline have work.
        tm = _round_up(pl.cdiv(b8, 2), 8) if b8 > 16 else b8
    else:
        tm = tile_m
    while tm > 8 and _vmem_estimate_bytes(tm, f0, padded_params,
                                          io_itemsize) > _VMEM_TILE_BUDGET:
        tm = max(8, _round_up(tm // 2, 8))
    b_pad = _round_up(batch, tm)
    return tm, b_pad


def _fused_mlp_call(x_pad, padded_params, tm, compute_dtype):
    b_pad, f0 = x_pad.shape
    assert b_pad % tm == 0
    num_layers = len(padded_params)
    f_out = padded_params[-1][0].shape[1]   # TRUE head width (unpadded)
    grid = (b_pad // tm,)

    in_specs = [pl.BlockSpec((tm, f0), lambda i: (i, 0))]
    flat_params = []
    for w, b in padded_params:
        in_specs.append(_resident_spec(w.shape))
        in_specs.append(_resident_spec(b.shape))
        flat_params.extend([w, b])

    est = _vmem_estimate_bytes(tm, f0, padded_params, x_pad.dtype.itemsize)
    vmem_limit = int(min(max(2 * est, 32 * 1024 * 1024), 64 * 1024 * 1024))

    kernel = functools.partial(
        _fused_mlp_kernel, num_layers=num_layers, compute_dtype=compute_dtype
    )
    return pl.pallas_call(
        kernel,
        out_shape=jax.ShapeDtypeStruct((b_pad, f_out), x_pad.dtype),
        grid=grid,
        in_specs=in_specs,
        out_specs=pl.BlockSpec((tm, f_out), lambda i: (i, 0)),
        compiler_params=pltpu.CompilerParams(
            dimension_semantics=("parallel",),   # batch tiles are independent
            vmem_limit_bytes=vmem_limit,
        ),
    )(x_pad, *flat_params)


# --------------------------------------------------------------------------
# Parameter init (matches FeatureExtractor.__init__ shapes / schemes)
# --------------------------------------------------------------------------
def init_feature_extractor_params(layers, key, init_method="normal"):
    """For each i: weight [layers[i], layers[i+1]] (transposed for X @ W),
    bias [layers[i+1]] = 0."""
    params = []
    for i in range(len(layers) - 1):
        key, wkey = jax.random.split(key)
        f_in, f_out = layers[i], layers[i + 1]
        if init_method == "normal":
            w = 0.1 * jax.random.normal(wkey, (f_in, f_out), dtype=jnp.float32)
        elif init_method == "uniform":
            w = jax.random.uniform(
                wkey, (f_in, f_out), dtype=jnp.float32, minval=-0.05, maxval=0.05
            )
        elif init_method == "xavier":
            std = (2.0 / (f_in + f_out)) ** 0.5
            w = std * jax.random.normal(wkey, (f_in, f_out), dtype=jnp.float32)
        elif init_method == "he":
            gain = 5.0 / 3.0  # kaiming_normal, nonlinearity='tanh', fan_in
            std = gain / (f_in ** 0.5)
            w = std * jax.random.normal(wkey, (f_in, f_out), dtype=jnp.float32)
        elif init_method == "custom":
            w = jnp.full((f_in, f_out), 0.01, dtype=jnp.float32)
        else:
            raise ValueError(f"Unknown initialization method: {init_method}")
        b = jnp.zeros((f_out,), dtype=jnp.float32)
        params.append((w, b))
    return params


def prepare_padded_params(params, compute_dtype=jnp.bfloat16):
    """One-time prep: zero-pad HIDDEN widths to multiples of 128 lanes (the
    final head keeps its true width), reshape biases to (1, f_out), and cast
    weights to compute_dtype.  Padding is exact: padded weight columns/bias
    entries are zero -> padded hidden activations are tanh(0)=0, and padded
    weight rows are zero -> they contribute nothing downstream."""
    padded = []
    prev_in = params[0][0].shape[0]  # input feature width stays unpadded
    n = len(params)
    for li, (w, b) in enumerate(params):
        f_in, f_out = w.shape
        last = li == n - 1
        f_out_pad = f_out if last else _round_up(f_out, 128)
        wp = jnp.zeros((prev_in, f_out_pad), jnp.float32).at[:f_in, :f_out].set(w)
        bp = jnp.zeros((1, f_out_pad), jnp.float32).at[0, :f_out].set(b)
        padded.append((wp.astype(compute_dtype), bp))
        prev_in = f_out_pad
    return padded


# --------------------------------------------------------------------------
# Forward factory: pad/cast params once, return a jitted forward(x).
# --------------------------------------------------------------------------
def make_feature_extractor_forward(params, *, tile_m=1024,
                                   compute_dtype=jnp.bfloat16):
    """Returns jitted forward(x): tanh after every layer except the last
    (matches the PyTorch module).  compute_dtype=bf16 is the fast MXU path on
    v5e/v6e/v7x; pass jnp.float32 for bit-tight checking."""
    padded_params = prepare_padded_params(params, compute_dtype)

    @jax.jit
    def forward(x):
        batch, f0 = x.shape
        tm, b_pad = _choose_tile(batch, tile_m, f0, padded_params,
                                 x.dtype.itemsize)
        x_p = jnp.pad(x, ((0, b_pad - batch), (0, 0))) if b_pad != batch else x
        y = _fused_mlp_call(x_p, padded_params, tm, compute_dtype)
        return y[:batch] if b_pad != batch else y

    return forward


def l2_regularization(params):
    return sum(jnp.sum(w ** 2) + jnp.sum(b ** 2) for w, b in params)


def l1_regularization(params):
    return sum(jnp.sum(jnp.abs(w)) + jnp.sum(jnp.abs(b)) for w, b in params)


# --------------------------------------------------------------------------
if __name__ == "__main__":
    # Small MLP consistent with FeatureExtractor(layers=[32, 64, 64, 16]).
    layers = [32, 64, 64, 16]
    batch = 50          # not a multiple of the tile -> exercises row padding

    key = jax.random.PRNGKey(0)
    key, xkey = jax.random.split(key)
    x = jax.random.normal(xkey, (batch, layers[0]), dtype=jnp.float32)

    params = init_feature_extractor_params(layers, key, init_method="normal")

    # Plain-JAX reference of the same math (f32).
    ref = x
    for i, (w, b) in enumerate(params):
        ref = ref @ w + b
        if i < len(params) - 1:
            ref = jnp.tanh(ref)

    # 1) f32 MXU path, small tile -> multi-step grid; must match tightly.
    fwd_f32 = make_feature_extractor_forward(
        params, tile_m=32, compute_dtype=jnp.float32
    )
    out_f32 = jax.block_until_ready(fwd_f32(x))
    assert out_f32.shape == (batch, layers[-1])
    assert jnp.allclose(out_f32, ref, atol=1e-5, rtol=1e-5)

    # 2) Default perf mode: bf16 MXU inputs, f32 accumulation/bias/tanh.
    fwd_bf16 = make_feature_extractor_forward(params)
    out_bf16 = jax.block_until_ready(fwd_bf16(x))
    assert out_bf16.shape == (batch, layers[-1])
    assert jnp.allclose(out_bf16, ref, atol=3e-2, rtol=3e-2)

    print("KERNEL_OK")
</pallas_src>

<mosaic_0001>
module attributes {stable_mosaic.version = 11 : i64} {
  func.func @_fused_mlp_kernel(%arg0: i32, %arg1: memref<32x32xf32, #tpu.memory_space<vmem>>, %arg2: memref<32x128xf32, #tpu.memory_space<vmem>>, %arg3: memref<1x128xf32, #tpu.memory_space<vmem>>, %arg4: memref<128x128xf32, #tpu.memory_space<vmem>>, %arg5: memref<1x128xf32, #tpu.memory_space<vmem>>, %arg6: memref<128x16xf32, #tpu.memory_space<vmem>>, %arg7: memref<1x16xf32, #tpu.memory_space<vmem>>, %arg8: memref<32x16xf32, #tpu.memory_space<vmem>>) attributes {dimension_semantics = [#tpu.dimension_semantics<parallel>], iteration_bounds = array<i64: 2>, scalar_prefetch = 0 : i64, scratch_operands = 0 : i64, tpu.core_type = #tpu.core_type<tc>, window_params = [{transform_indices = @transform_0, window_bounds = array<i64: 32, 32>}, {pipeline_mode = #tpu.pipeline_mode<synchronous>, transform_indices = @transform_1, window_bounds = array<i64: 32, 128>}, {pipeline_mode = #tpu.pipeline_mode<synchronous>, transform_indices = @transform_2, window_bounds = array<i64: 1, 128>}, {pipeline_mode = #tpu.pipeline_mode<synchronous>, transform_indices = @transform_3, window_bounds = array<i64: 128, 128>}, {pipeline_mode = #tpu.pipeline_mode<synchronous>, transform_indices = @transform_4, window_bounds = array<i64: 1, 128>}, {pipeline_mode = #tpu.pipeline_mode<synchronous>, transform_indices = @transform_5, window_bounds = array<i64: 128, 16>}, {pipeline_mode = #tpu.pipeline_mode<synchronous>, transform_indices = @transform_6, window_bounds = array<i64: 1, 16>}, {transform_indices = @transform_7, window_bounds = array<i64: 32, 16>}]} {
    %c0 = arith.constant 0 : index
    %c0_0 = arith.constant 0 : index
    %0 = vector.load %arg1[%c0, %c0_0] : memref<32x32xf32, #tpu.memory_space<vmem>>, vector<32x32xf32>
    %c0_1 = arith.constant 0 : index
    %c0_2 = arith.constant 0 : index
    %1 = vector.load %arg2[%c0_1, %c0_2] : memref<32x128xf32, #tpu.memory_space<vmem>>, vector<32x128xf32>
    %c0_3 = arith.constant 0 : index
    %c0_4 = arith.constant 0 : index
    %2 = vector.load %arg3[%c0_3, %c0_4] : memref<1x128xf32, #tpu.memory_space<vmem>>, vector<1x128xf32>
    %cst = arith.constant dense<0.000000e+00> : vector<32x128xf32>
    %3 = tpu.matmul %0, %1, %cst {dimension_numbers = #tpu.dot_dimension_numbers<[1], [0], [0], [1], [0, 0, 1, 1], [], []>} : vector<32x32xf32>, vector<32x128xf32>, vector<32x128xf32> -> vector<32x128xf32>
    %4 = vector.broadcast %2 : vector<1x128xf32> to vector<32x128xf32>
    %5 = arith.addf %3, %4 : vector<32x128xf32>
    %6 = math.tanh %5 : vector<32x128xf32>
    %c0_5 = arith.constant 0 : index
    %c0_6 = arith.constant 0 : index
    %7 = vector.load %arg4[%c0_5, %c0_6] : memref<128x128xf32, #tpu.memory_space<vmem>>, vector<128x128xf32>
    %c0_7 = arith.constant 0 : index
    %c0_8 = arith.constant 0 : index
    %8 = vector.load %arg5[%c0_7, %c0_8] : memref<1x128xf32, #tpu.memory_space<vmem>>, vector<1x128xf32>
    %cst_9 = arith.constant dense<0.000000e+00> : vector<32x128xf32>
    %9 = tpu.matmul %6, %7, %cst_9 {dimension_numbers = #tpu.dot_dimension_numbers<[1], [0], [0], [1], [0, 0, 1, 1], [], []>} : vector<32x128xf32>, vector<128x128xf32>, vector<32x128xf32> -> vector<32x128xf32>
    %10 = vector.broadcast %8 : vector<1x128xf32> to vector<32x128xf32>
    %11 = arith.addf %9, %10 : vector<32x128xf32>
    %12 = math.tanh %11 : vector<32x128xf32>
    %c0_10 = arith.constant 0 : index
    %c0_11 = arith.constant 0 : index
    %13 = vector.load %arg6[%c0_10, %c0_11] : memref<128x16xf32, #tpu.memory_space<vmem>>, vector<128x16xf32>
    %c0_12 = arith.constant 0 : index
    %c0_13 = arith.constant 0 : index
    %14 = vector.load %arg7[%c0_12, %c0_13] : memref<1x16xf32, #tpu.memory_space<vmem>>, vector<1x16xf32>
    %cst_14 = arith.constant dense<0.000000e+00> : vector<32x16xf32>
    %15 = tpu.matmul %12, %13, %cst_14 {dimension_numbers = #tpu.dot_dimension_numbers<[1], [0], [0], [1], [0, 0, 1, 1], [], []>} : vector<32x128xf32>, vector<128x16xf32>, vector<32x16xf32> -> vector<32x16xf32>
    %16 = vector.broadcast %14 : vector<1x16xf32> to vector<32x16xf32>
    %17 = arith.addf %15, %16 : vector<32x16xf32>
    %c0_15 = arith.constant 0 : index
    %c0_16 = arith.constant 0 : index
    %18 = vector.load %arg8[%c0_15, %c0_16] : memref<32x16xf32, #tpu.memory_space<vmem>>, vector<32x16xf32>
    tpu.vector_store %arg8[%c0_15, %c0_16], %17 {strides = array<i32>} : memref<32x16xf32, #tpu.memory_space<vmem>>, vector<32x16xf32>,
    return
  }
  func.func @transform_0(%arg0: i32) -> (i32, i32) {
    %c0_i32 = arith.constant 0 : i32
    %c0_i32_0 = arith.constant 0 : i32
    return %arg0, %c0_i32 : i32, i32
  }
  func.func @transform_1(%arg0: i32) -> (i32, i32) {
    %c0_i32 = arith.constant 0 : i32
    %c0_i32_0 = arith.constant 0 : i32
    %c0_i32_1 = arith.constant 0 : i32
    return %c0_i32, %c0_i32_0 : i32, i32
  }
  func.func @transform_2(%arg0: i32) -> (i32, i32) {
    %c0_i32 = arith.constant 0 : i32
    %c0_i32_0 = arith.constant 0 : i32
    %c0_i32_1 = arith.constant 0 : i32
    return %c0_i32, %c0_i32_0 : i32, i32
  }
  func.func @transform_3(%arg0: i32) -> (i32, i32) {
    %c0_i32 = arith.constant 0 : i32
    %c0_i32_0 = arith.constant 0 : i32
    %c0_i32_1 = arith.constant 0 : i32
    return %c0_i32, %c0_i32_0 : i32, i32
  }
  func.func @transform_4(%arg0: i32) -> (i32, i32) {
    %c0_i32 = arith.constant 0 : i32
    %c0_i32_0 = arith.constant 0 : i32
    %c0_i32_1 = arith.constant 0 : i32
    return %c0_i32, %c0_i32_0 : i32, i32
  }
  func.func @transform_5(%arg0: i32) -> (i32, i32) {
    %c0_i32 = arith.constant 0 : i32
    %c0_i32_0 = arith.constant 0 : i32
    %c0_i32_1 = arith.constant 0 : i32
    return %c0_i32, %c0_i32_0 : i32, i32
  }
  func.func @transform_6(%arg0: i32) -> (i32, i32) {
    %c0_i32 = arith.constant 0 : i32
    %c0_i32_0 = arith.constant 0 : i32
    %c0_i32_1 = arith.constant 0 : i32
    return %c0_i32, %c0_i32_0 : i32, i32
  }
  func.func @transform_7(%arg0: i32) -> (i32, i32) {
    %c0_i32 = arith.constant 0 : i32
    %c0_i32_0 = arith.constant 0 : i32
    return %arg0, %c0_i32 : i32, i32
  }
}

</mosaic_0001>

<llo_original>
// kernel: forward.1
$region0: #{forward.1}
  #allocation0 [shape = 'u32[]', space=smem, size = 0x4, offset = 0x4, fixed_abs, tag = 'smem constant byte address 0x4 - core index']
  #allocation1 [shape = 'u32[144,128]{1,0:T(1,128)}', space=vmem, size = 0x12000, scoped, tag = 'internal scratch']
  %s0 = inlined_call_operand.vmem [shape: f32[64,32], index: 0, kind: input, shape index: {}]
  %s1 = inlined_call_operand.vmem [shape: f32[32,128], index: 1, kind: input, shape index: {}]
  %s2 = inlined_call_operand.vmem [shape: f32[1,128], index: 2, kind: input, shape index: {}, may-alias: {2,4}]
  %s3 = inlined_call_operand.hbm [shape: f32[128,128], index: 3, kind: input, shape index: {}]
  %s4 = inlined_call_operand.vmem [shape: f32[1,128], index: 4, kind: input, shape index: {}, may-alias: {2,4}]
  %s5 = inlined_call_operand.vmem [shape: f32[128,16], index: 5, kind: input, shape index: {}]
  %s6 = inlined_call_operand.vmem [shape: f32[1,16], index: 6, kind: input, shape index: {}]
  %s7 = inlined_call_operand.vmem [shape: f32[64,16], index: 7, kind: output, shape index: {}]
  %s8 = sld [smem:[#allocation0]]
  $region65: #{forward.1} parent=0
    _
  %s10 = ssub.s32 1, %s8
  %s11 = scalar_select 0, %s10, %s8
  $region1: #{forward.1} parent=0
    #allocation2 [shape = 'u8[65536]{0}', space=vmem, size = 0x10000, scoped, tag = 'input window, operand 3, single buffered']
    #allocation3 [shape = 's32[2]{0}', space=sflag, size = 0x8, scoped, tag = 'scoped memory for forward.1']
    %12 = vsyncpa [#allocation3], 0
    loop: start=0, step=1, limit=4
    $region2: #{forward.1} parent=1 // loop_pre_header
      _
    $region3: #{forward.1} parent=1 // loop_header
      %s14 = sphi 0, %s18
      %p15 = scmp.ge.s32.totalorder %s14, 4
      %s24 = sphi 0, %s26
      %s27 = sphi 0, %s24
      %s28 = sphi 0, %s27
      %s44 = sphi 0, %s28
      %s48 = sphi 0, %s48
      %s50 = sphi 0, %s48
      %s51 = sphi 0, %s50
      %s65 = sphi 0, %s51
      %s69 = sphi 0, %s69
      %s71 = sphi 0, %s69
      %s72 = sphi 0, %s71
      %s86 = sphi 0, %s72
      %s90 = sphi 0, %s90
      %s92 = sphi 0, %s90
      %s93 = sphi 0, %s92
      %s107 = sphi 0, %s93
      %s111 = sphi 0, %s111
      %s113 = sphi 0, %s111
      %s114 = sphi 0, %s113
      %s128 = sphi 0, %s114
      %s132 = sphi 0, %s132
      %s134 = sphi 0, %s132
      %s135 = sphi 0, %s134
      %s149 = sphi 0, %s135
      %s153 = sphi 0, %s153
      %s155 = sphi 0, %s153
      %s156 = sphi 0, %s155
      %s170 = sphi 0, %s156
      %s176 = sphi 0, %s178
      %s179 = sphi 0, %s176
      %s180 = sphi 0, %s179
      %s196 = sphi 0, %s180
    $region4: #{forward.1} parent=1 // loop_header_branch
      %17 = sbr.rel (%p15) target = $region8
    $region5: #{forward.1} parent=1 // loop_body
      %s19 = ssub.s32 %s14, 1
      %s20 = ssub.s32 %s14, 2
      %s21 = sadd.s32 %s14, 1
      %s22 = ssub.s32 %s14, %s21
      %p23 = scmp.eq.s32.totalorder %s22, 0
      %s25 = sadd.s32 %s24, 1
      %s26 = scalar_select %p23, %s24, %s25
      %p29 = pneg %p23
      %p30 = scmp.eq.s32.totalorder %s14, 1
      %p31 = por %p29, %p30
      %p32 = scmp.ne.s32.totalorder %s24, %s27
      %p33 = scmp.eq.s32.totalorder %s14, 0
      %p34 = por %p32, %p33
      %p35 = scmp.ne.s32.totalorder %s24, %s27
      %p36 = scmp.eq.s32.totalorder %s19, 1
      %p37 = por %p35, %p36
      %p38 = scmp.ne.s32.totalorder %s27, %s28
      %p39 = scmp.eq.s32.totalorder %s19, 0
      %p40 = por %p38, %p39
      %p41 = scmp.ne.s32.totalorder %s27, %s28
      %p42 = scmp.eq.s32.totalorder %s20, 1
      %p43 = por %p41, %p42
      %p45 = scmp.ne.s32.totalorder %s28, %s44
      %p46 = scmp.eq.s32.totalorder %s20, 0
      %p47 = por %p45, %p46
      %s49 = sadd.s32 %s48, 1
      %p52 = scmp.eq.s32.totalorder %s14, 1
      %p53 = scmp.ne.s32.totalorder %s48, %s50
      %p54 = scmp.eq.s32.totalorder %s14, 0
      %p55 = por %p53, %p54
      %p56 = scmp.ne.s32.totalorder %s48, %s50
      %p57 = scmp.eq.s32.totalorder %s19, 1
      %p58 = por %p56, %p57
      %p59 = scmp.ne.s32.totalorder %s50, %s51
      %p60 = scmp.eq.s32.totalorder %s19, 0
      %p61 = por %p59, %p60
      %p62 = scmp.ne.s32.totalorder %s50, %s51
      %p63 = scmp.eq.s32.totalorder %s20, 1
      %p64 = por %p62, %p63
      %p66 = scmp.ne.s32.totalorder %s51, %s65
      %p67 = scmp.eq.s32.totalorder %s20, 0
      %p68 = por %p66, %p67
      %s70 = sadd.s32 %s69, 1
      %p73 = scmp.eq.s32.totalorder %s14, 1
      %p74 = scmp.ne.s32.totalorder %s69, %s71
      %p75 = scmp.eq.s32.totalorder %s14, 0
      %p76 = por %p74, %p75
      %p77 = scmp.ne.s32.totalorder %s69, %s71
      %p78 = scmp.eq.s32.totalorder %s19, 1
      %p79 = por %p77, %p78
      %p80 = scmp.ne.s32.totalorder %s71, %s72
      %p81 = scmp.eq.s32.totalorder %s19, 0
      %p82 = por %p80, %p81
      %p83 = scmp.ne.s32.totalorder %s71, %s72
      %p84 = scmp.eq.s32.totalorder %s20, 1
      %p85 = por %p83, %p84
      %p87 = scmp.ne.s32.totalorder %s72, %s86
      %p88 = scmp.eq.s32.totalorder %s20, 0
      %p89 = por %p87, %p88
      %s91 = sadd.s32 %s90, 1
      %p94 = scmp.eq.s32.totalorder %s14, 1
      %p95 = scmp.ne.s32.totalorder %s90, %s92
      %p96 = scmp.eq.s32.totalorder %s14, 0
      %p97 = por %p95, %p96
      %p98 = scmp.ne.s32.totalorder %s90, %s92
      %p99 = scmp.eq.s32.totalorder %s19, 1
      %p100 = por %p98, %p99
      %p101 = scmp.ne.s32.totalorder %s92, %s93
      %p102 = scmp.eq.s32.totalorder %s19, 0
      %p103 = por %p101, %p102
      %p104 = scmp.ne.s32.totalorder %s92, %s93
      %p105 = scmp.eq.s32.totalorder %s20, 1
      %p106 = por %p104, %p105
      %p108 = scmp.ne.s32.totalorder %s93, %s107
      %p109 = scmp.eq.s32.totalorder %s20, 0
      %p110 = por %p108, %p109
      %s112 = sadd.s32 %s111, 1
      %p115 = scmp.eq.s32.totalorder %s14, 1
      %p116 = scmp.ne.s32.totalorder %s111, %s113
      %p117 = scmp.eq.s32.totalorder %s14, 0
      %p118 = por %p116, %p117
      %p119 = scmp.ne.s32.totalorder %s111, %s113
      %p120 = scmp.eq.s32.totalorder %s19, 1
      %p121 = por %p119, %p120
      %p122 = scmp.ne.s32.totalorder %s113, %s114
      %p123 = scmp.eq.s32.totalorder %s19, 0
      %p124 = por %p122, %p123
      %p125 = scmp.ne.s32.totalorder %s113, %s114
      %p126 = scmp.eq.s32.totalorder %s20, 1
      %p127 = por %p125, %p126
      %p129 = scmp.ne.s32.totalorder %s114, %s128
      %p130 = scmp.eq.s32.totalorder %s20, 0
      %p131 = por %p129, %p130
      %s133 = sadd.s32 %s132, 1
      %p136 = scmp.eq.s32.totalorder %s14, 1
      %p137 = scmp.ne.s32.totalorder %s132, %s134
      %p138 = scmp.eq.s32.totalorder %s14, 0
      %p139 = por %p137, %p138
      %p140 = scmp.ne.s32.totalorder %s132, %s134
      %p141 = scmp.eq.s32.totalorder %s19, 1
      %p142 = por %p140, %p141
      %p143 = scmp.ne.s32.totalorder %s134, %s135
      %p144 = scmp.eq.s32.totalorder %s19, 0
      %p145 = por %p143, %p144
      %p146 = scmp.ne.s32.totalorder %s134, %s135
      %p147 = scmp.eq.s32.totalorder %s20, 1
      %p148 = por %p146, %p147
      %p150 = scmp.ne.s32.totalorder %s135, %s149
      %p151 = scmp.eq.s32.totalorder %s20, 0
      %p152 = por %p150, %p151
      %s154 = sadd.s32 %s153, 1
      %p157 = scmp.eq.s32.totalorder %s14, 1
      %p158 = scmp.ne.s32.totalorder %s153, %s155
      %p159 = scmp.eq.s32.totalorder %s14, 0
      %p160 = por %p158, %p159
      %p161 = scmp.ne.s32.totalorder %s153, %s155
      %p162 = scmp.eq.s32.totalorder %s19, 1
      %p163 = por %p161, %p162
      %p164 = scmp.ne.s32.totalorder %s155, %s156
      %p165 = scmp.eq.s32.totalorder %s19, 0
      %p166 = por %p164, %p165
      %p167 = scmp.ne.s32.totalorder %s155, %s156
      %p168 = scmp.eq.s32.totalorder %s20, 1
      %p169 = por %p167, %p168
      %p171 = scmp.ne.s32.totalorder %s156, %s170
      %p172 = scmp.eq.s32.totalorder %s20, 0
      %p173 = por %p171, %p172
      %s174 = ssub.s32 %s14, %s21
      %p175 = scmp.eq.s32.totalorder %s174, 0
      %s177 = sadd.s32 %s176, 1
      %s178 = scalar_select %p175, %s176, %s177
      %p181 = pneg %p175
      %p182 = scmp.eq.s32.totalorder %s14, 1
      %p183 = por %p181, %p182
      %p184 = scmp.ne.s32.totalorder %s176, %s179
      %p185 = scmp.eq.s32.totalorder %s14, 0
      %p186 = por %p184, %p185
      %p187 = scmp.ne.s32.totalorder %s176, %s179
      %p188 = scmp.eq.s32.totalorder %s19, 1
      %p189 = por %p187, %p188
      %p190 = scmp.ne.s32.totalorder %s179, %s180
      %p191 = scmp.eq.s32.totalorder %s19, 0
      %p192 = por %p190, %p191
      %p193 = scmp.ne.s32.totalorder %s179, %s180
      %p194 = scmp.eq.s32.totalorder %s20, 1
      %p195 = por %p193, %p194
      %p197 = scmp.ne.s32.totalorder %s180, %s196
      %p198 = scmp.eq.s32.totalorder %s20, 0
      %p199 = por %p197, %p198
      %p200 = scmp.le.s32.totalorder 1, %s14
      %p201 = scmp.lt.s32.totalorder %s14, 3
      %p202 = pnand %p200, %p201
      %p203 = pneg %p202
      // Predicated region
      $region9: #{forward.1} parent=5 // pred_check
        _
      $region10: #{forward.1} parent=5 // pred_check_branch
        %205 = sbr.rel (%p202) target = $region12
      $region11: #{forward.1} parent=5 // pred_region
        %s206 = ssub.s32 %s14, 1
        // Predicated region
        $region13: #{forward.1} parent=11 // pred_check
          %p207 = pneg %p61
        $region14: #{forward.1} parent=11 // pred_check_branch
          %209 = sbr.rel (%p207) target = $region16
        $region15: #{forward.1} parent=11 // pred_region
          _
        $region16: #{forward.1} parent=11 // pred_fallthru
          _
        // Predicated region
        $region17: #{forward.1} parent=11 // pred_check
          %p210 = pneg %p82
        $region18: #{forward.1} parent=11 // pred_check_branch
          %212 = sbr.rel (%p210) target = $region20
        $region19: #{forward.1} parent=11 // pred_region
          _
        $region20: #{forward.1} parent=11 // pred_fallthru
          _
        // Predicated region
        $region21: #{forward.1} parent=11 // pred_check
          %p213 = pneg %p103
        $region22: #{forward.1} parent=11 // pred_check_branch
          %215 = sbr.rel (%p213) target = $region24
        $region23: #{forward.1} parent=11 // pred_region
          %s217 = ssub.s32 2048, 2048
          %218 = vsyncadd [#allocation3], %s217
          %s219 = sshll.u32 [#allocation2], 4
          %s220 = int_to_ptr.vmem [resolvable:$true] %s219
          %225 = dma.hbm_to_vmem [thread:$0]  %s3, 2048, %s220, [#allocation3], 128, 128, 8
        $region24: #{forward.1} parent=11 // pred_fallthru
          _
        // Predicated region
        $region25: #{forward.1} parent=11 // pred_check
          %p226 = pneg %p124
        $region26: #{forward.1} parent=11 // pred_check_branch
          %228 = sbr.rel (%p226) target = $region28
        $region27: #{forward.1} parent=11 // pred_region
          _
        $region28: #{forward.1} parent=11 // pred_fallthru
          _
        // Predicated region
        $region29: #{forward.1} parent=11 // pred_check
          %p229 = pneg %p145
        $region30: #{forward.1} parent=11 // pred_check_branch
          %231 = sbr.rel (%p229) target = $region32
        $region31: #{forward.1} parent=11 // pred_region
          _
        $region32: #{forward.1} parent=11 // pred_fallthru
          _
        // Predicated region
        $region33: #{forward.1} parent=11 // pred_check
          %p232 = pneg %p166
        $region34: #{forward.1} parent=11 // pred_check_branch
          %234 = sbr.rel (%p232) target = $region36
        $region35: #{forward.1} parent=11 // pred_region
          _
        $region36: #{forward.1} parent=11 // pred_fallthru
          _
      $region12: #{forward.1} parent=5 // pred_fallthru
        _
      %p235 = scmp.lt.s32.totalorder %s14, 2
      // Predicated region
      $region37: #{forward.1} parent=5 // pred_check
        %p236 = pneg %p235
      $region38: #{forward.1} parent=5 // pred_check_branch
        %238 = sbr.rel (%p236) target = $region40
      $region39: #{forward.1} parent=5 // pred_region
        // Predicated region
        $region41: #{forward.1} parent=39 // pred_check
          %p239 = pneg %p34
        $region42: #{forward.1} parent=39 // pred_check_branch
          %241 = sbr.rel (%p239) target = $region44
        $region43: #{forward.1} parent=39 // pred_region
          %s242 = smul.u32 4, %s14
          %p243 = scmp.lt.s32.totalorder %s242, 7
          %s244 = scalar_select %p243, %s242, 7
          %s245 = smul.addr %s244, 8
          %s246 = scalar_lea.vmem %s0, %s245
          %s247 = smul.u32 4, %s14
        $region44: #{forward.1} parent=39 // pred_fallthru
          _
      $region40: #{forward.1} parent=5 // pred_fallthru
        _
      %p248 = scmp.le.s32.totalorder 1, %s14
      %p249 = scmp.lt.s32.totalorder %s14, 3
      %p250 = pnand %p248, %p249
      %p251 = pneg %p250
      // Predicated region
      $region45: #{forward.1} parent=5 // pred_check
        _
      $region46: #{forward.1} parent=5 // pred_check_branch
        %253 = sbr.rel (%p250) target = $region48
      $region47: #{forward.1} parent=5 // pred_region
        %s254 = ssub.s32 %s14, 1
        // Predicated region
        $region49: #{forward.1} parent=47 // pred_check
          %p255 = pneg %p103
        $region50: #{forward.1} parent=47 // pred_check_branch
          %257 = sbr.rel (%p255) target = $region52
        $region51: #{forward.1} parent=47 // pred_region
          %258 = dma.done [#allocation3], 2048
        $region52: #{forward.1} parent=47 // pred_fallthru
          _
        %s259 = smul.u32 4, %s19
        %p260 = scmp.lt.s32.totalorder %s259, 7
        %s261 = scalar_select %p260, %s259, 7
        %s262 = smul.addr %s261, 8
        %s263 = scalar_lea.vmem %s0, %s262
        %p264 = pneg %p40
        %p265 = pneg %p37
        %p266 = pneg %p61
        %p267 = pneg %p58
        %p268 = pneg %p82
        %p269 = pneg %p79
        %p270 = pneg %p103
        %p271 = pneg %p100
        %p272 = pneg %p124
        %p273 = pneg %p121
        %p274 = pneg %p145
        %p275 = pneg %p142
        %p276 = pneg %p166
        %p277 = pneg %p163
        %p278 = pneg %p192
        %p279 = pneg %p189
        %s280 = smul.u32 4, %s19
        %p281 = scmp.lt.s32.totalorder %s280, 7
        %s282 = scalar_select %p281, %s280, 7
        %s283 = smul.addr %s282, 8
        %s284 = scalar_lea.vmem %s7, %s283
        %s285 = smul.u32 4, %s19
        %p286 = scmp.lt.s32.totalorder %s285, 7
        %s287 = scalar_select %p286, %s285, 7
        %s288 = smul.addr %s287, 8
        %s289 = scalar_lea.vmem %s0, %s288
        %s290 = smul.u32 4, %s19
        %s291 = smul.u32 4, %s19
        %p292 = scmp.lt.s32.totalorder %s291, 7
        %s293 = scalar_select %p292, %s291, 7
        %s294 = smul.addr %s293, 8
        %s295 = scalar_lea.vmem %s7, %s294
        %s296 = smul.u32 4, %s19
        %v297 = vld [vmem:[%s289] sm:$0xff]
        %v298 = vld [vmem:[%s289 + $0x8] sm:$0xff]
        %v299 = vld [vmem:[%s289 + $0x10] sm:$0xff]
        %v300 = vld [vmem:[%s289 + $0x18] sm:$0xff]
        %v301 = vld [vmem:[%s1] sm:$0xff]
        %v302 = vld [vmem:[%s1 + $0x8] sm:$0xff]
        %v303 = vld [vmem:[%s1 + $0x10] sm:$0xff]
        %v304 = vld [vmem:[%s1 + $0x18] sm:$0xff]
        %v305 = vld [vmem:[%s2] sm:$0x1]
        %v307 = vlaneseq
        %v308 = vshrl.u32 %v307, 7
        %v309 = vsub.s32 0, %v308
        %v310 = vrot.slane %v305, %v309
        %vm312 = vcmask 261120
        %v314 = vsel %vm312, %v297, 0
        %v317 = vsel %vm312, %v298, 0
        %v320 = vsel %vm312, %v299, 0
        %v323 = vsel %vm312, %v300, 0
        %325 = vmatprep.subr.mxu0 0.0
        %326 = vmatpush1.msra.mxu0 %v301
        %327 = vmatprep.subr.mxu0 0.0
        %328 = vmatpush1.msra.mxu0 %v302
        %329 = vmatprep.subr.mxu0 0.0
        %330 = vmatpush1.msra.mxu0 %v303
        %331 = vmatprep.subr.mxu0 0.0
        %332 = vmatpush1.msra.mxu0 %v304
        %333 = vmatprep.subr.mxu0 0.0
        %334 = vmatpush1.msra.mxu0 0.0
        %335 = vmatprep.subr.mxu0 0.0
        %336 = vmatpush1.msra.mxu0 0.0
        %337 = vmatprep.subr.mxu0 0.0
        %338 = vmatpush1.msra.mxu0 0.0
        %339 = vmatprep.subr.mxu0 0.0
        %340 = vmatpush1.msra.mxu0 0.0
        %341 = vmatprep.subr.mxu0 0.0
        %342 = vmatpush1.msra.mxu0 0.0
        %343 = vmatprep.subr.mxu0 0.0
        %344 = vmatpush1.msra.mxu0 0.0
        %345 = vmatprep.subr.mxu0 0.0
        %346 = vmatpush1.msra.mxu0 0.0
        %347 = vmatprep.subr.mxu0 0.0
        %348 = vmatpush1.msra.mxu0 0.0
        %349 = vmatprep.subr.mxu0 0.0
        %350 = vmatpush1.msra.mxu0 0.0
        %351 = vmatprep.subr.mxu0 0.0
        %352 = vmatpush1.msra.mxu0 0.0
        %353 = vmatprep.subr.mxu0 0.0
        %354 = vmatpush1.msra.mxu0 0.0
        %355 = vmatprep.subr.mxu0 0.0
        %356 = vmatpush1.msra.mxu0 0.0
        %357 = vmatprep.subr.mxu0 0.0
        %358 = vmatpush1.msra.mxu0 0.0
        %359 = vmatprep.subr.mxu0 0.0
        %360 = vmatpush1.msra.mxu0 0.0
        %361 = vmatprep.subr.mxu0 0.0
        %362 = vmatpush1.msra.mxu0 0.0
        %363 = vmatprep.subr.mxu0 0.0
        %364 = vmatpush1.msra.mxu0 0.0
        %365 = vmatprep.subr.mxu0 0.0
        %366 = vmatpush1.msra.mxu0 0.0
        %367 = vmatprep.subr.mxu0 0.0
        %368 = vmatpush1.msra.mxu0 0.0
        %369 = vmatprep.subr.mxu0 0.0
        %370 = vmatpush1.msra.mxu0 0.0
        %371 = vmatprep.subr.mxu0 0.0
        %372 = vmatpush1.msra.mxu0 0.0
        %373 = vmatprep.subr.mxu0 0.0
        %374 = vmatpush1.msra.mxu0 0.0
        %375 = vmatprep.subr.mxu0 0.0
        %376 = vmatpush1.msra.mxu0 0.0
        %377 = vmatprep.subr.mxu0 0.0
        %378 = vmatpush1.msra.mxu0 0.0
        %379 = vmatprep.subr.mxu0 0.0
        %380 = vmatpush1.msra.mxu0 0.0
        %381 = vmatprep.subr.mxu0 0.0
        %382 = vmatpush1.msra.mxu0 0.0
        %383 = vmatprep.subr.mxu0 0.0
        %384 = vmatpush1.msra.mxu0 0.0
        %385 = vmatprep.subr.mxu0 0.0
        %386 = vmatpush1.msra.mxu0 0.0
        %387 = vmatprep.subr.mxu0 0.0
        %388 = vmatpush1.msra.mxu0 0.0
        %389 = vmatprep.mubr.f32.mxu0 0.0
        %390 = vmatmul.mubr.f32.gmra.mrb[0].mxu0 %v314
        %v391 = vpop.f32.mrb[0].mxu0
        %v392 = vadd.f32 %v310, %v391
        %v393 = vpop.f32.mrb[0].mxu0
        %394 = vmatprep.mubr.f32.mxu0 0.0
        %395 = vmatmul.mubr.f32.gmra.mrb[0].mxu0 %v317
        %v396 = vpop.f32.mrb[0].mxu0
        %v397 = vadd.f32 %v310, %v396
        %v398 = vpop.f32.mrb[0].mxu0
        %399 = vmatprep.mubr.f32.mxu0 0.0
        %400 = vmatmul.mubr.f32.gmra.mrb[0].mxu0 %v320
        %v401 = vpop.f32.mrb[0].mxu0
        %v402 = vadd.f32 %v310, %v401
        %v403 = vpop.f32.mrb[0].mxu0
        %404 = vmatprep.mubr.f32.mxu0 0.0
        %405 = vmatmul.mubr.f32.gmra.mrb[0].mxu0 %v323
        %v406 = vpop.f32.mrb[0].mxu0
        %v407 = vadd.f32 %v310, %v406
        %v408 = vpop.f32.mrb[0].mxu0
        %409 = vdwg.mxu0
        %v410 = vtanh.pop %v392
        %v411 = vtanh.pop %v397
        %v412 = vtanh.pop %v402
        %v413 = vtanh.pop %v407
        %v414 = vld [vmem:[#allocation2] sm:$0xff]
        %v415 = vld [vmem:[#allocation2 + $0x8] sm:$0xff]
        %v416 = vld [vmem:[#allocation2 + $0x10] sm:$0xff]
        %v417 = vld [vmem:[#allocation2 + $0x18] sm:$0xff]
        %v418 = vld [vmem:[#allocation2 + $0x20] sm:$0xff]
        %v419 = vld [vmem:[#allocation2 + $0x28] sm:$0xff]
        %v420 = vld [vmem:[#allocation2 + $0x30] sm:$0xff]
        %v421 = vld [vmem:[#allocation2 + $0x38] sm:$0xff]
        %v422 = vld [vmem:[#allocation2 + $0x40] sm:$0xff]
        %v423 = vld [vmem:[#allocation2 + $0x48] sm:$0xff]
        %v424 = vld [vmem:[#allocation2 + $0x50] sm:$0xff]
        %v425 = vld [vmem:[#allocation2 + $0x58] sm:$0xff]
        %v426 = vld [vmem:[#allocation2 + $0x60] sm:$0xff]
        %v427 = vld [vmem:[#allocation2 + $0x68] sm:$0xff]
        %v428 = vld [vmem:[#allocation2 + $0x70] sm:$0xff]
        %v429 = vld [vmem:[#allocation2 + $0x78] sm:$0xff]
        %v430 = vld [vmem:[%s4] sm:$0x1]
        %v432 = vlaneseq
        %v433 = vshrl.u32 %v432, 7
        %v434 = vsub.s32 0, %v433
        %v435 = vrot.slane %v430, %v434
        %437 = vmatprep.subr.mxu0 0.0
        %438 = vmatpush1.msra.mxu0 %v414
        %439 = vmatprep.subr.mxu0 0.0
        %440 = vmatpush1.msra.mxu0 %v415
        %441 = vmatprep.subr.mxu0 0.0
        %442 = vmatpush1.msra.mxu0 %v416
        %443 = vmatprep.subr.mxu0 0.0
        %444 = vmatpush1.msra.mxu0 %v417
        %445 = vmatprep.subr.mxu0 0.0
        %446 = vmatpush1.msra.mxu0 %v418
        %447 = vmatprep.subr.mxu0 0.0
        %448 = vmatpush1.msra.mxu0 %v419
        %449 = vmatprep.subr.mxu0 0.0
        %450 = vmatpush1.msra.mxu0 %v420
        %451 = vmatprep.subr.mxu0 0.0
        %452 = vmatpush1.msra.mxu0 %v421
        %453 = vmatprep.subr.mxu0 0.0
        %454 = vmatpush1.msra.mxu0 %v422
        %455 = vmatprep.subr.mxu0 0.0
        %456 = vmatpush1.msra.mxu0 %v423
        %457 = vmatprep.subr.mxu0 0.0
        %458 = vmatpush1.msra.mxu0 %v424
        %459 = vmatprep.subr.mxu0 0.0
        %460 = vmatpush1.msra.mxu0 %v425
        %461 = vmatprep.subr.mxu0 0.0
        %462 = vmatpush1.msra.mxu0 %v426
        %463 = vmatprep.subr.mxu0 0.0
        %464 = vmatpush1.msra.mxu0 %v427
        %465 = vmatprep.subr.mxu0 0.0
        %466 = vmatpush1.msra.mxu0 %v428
        %467 = vmatprep.subr.mxu0 0.0
        %468 = vmatpush1.msra.mxu0 %v429
        %469 = vmatprep.subr.mxu0 0.0
        %470 = vmatpush1.msra.mxu0 0.0
        %471 = vmatprep.subr.mxu0 0.0
        %472 = vmatpush1.msra.mxu0 0.0
        %473 = vmatprep.subr.mxu0 0.0
        %474 = vmatpush1.msra.mxu0 0.0
        %475 = vmatprep.subr.mxu0 0.0
        %476 = vmatpush1.msra.mxu0 0.0
        %477 = vmatprep.subr.mxu0 0.0
        %478 = vmatpush1.msra.mxu0 0.0
        %479 = vmatprep.subr.mxu0 0.0
        %480 = vmatpush1.msra.mxu0 0.0
        %481 = vmatprep.subr.mxu0 0.0
        %482 = vmatpush1.msra.mxu0 0.0
        %483 = vmatprep.subr.mxu0 0.0
        %484 = vmatpush1.msra.mxu0 0.0
        %485 = vmatprep.subr.mxu0 0.0
        %486 = vmatpush1.msra.mxu0 0.0
        %487 = vmatprep.subr.mxu0 0.0
        %488 = vmatpush1.msra.mxu0 0.0
        %489 = vmatprep.subr.mxu0 0.0
        %490 = vmatpush1.msra.mxu0 0.0
        %491 = vmatprep.subr.mxu0 0.0
        %492 = vmatpush1.msra.mxu0 0.0
        %493 = vmatprep.subr.mxu0 0.0
        %494 = vmatpush1.msra.mxu0 0.0
        %495 = vmatprep.subr.mxu0 0.0
        %496 = vmatpush1.msra.mxu0 0.0
        %497 = vmatprep.subr.mxu0 0.0
        %498 = vmatpush1.msra.mxu0 0.0
        %499 = vmatprep.subr.mxu0 0.0
        %500 = vmatpush1.msra.mxu0 0.0
        %501 = vmatprep.mubr.f32.mxu0 0.0
        %502 = vmatmul.mubr.f32.gmra.mrb[0].mxu0 %v410
        %v503 = vpop.f32.mrb[0].mxu0
        %v504 = vadd.f32 %v435, %v503
        %v505 = vpop.f32.mrb[0].mxu0
        %506 = vmatprep.mubr.f32.mxu0 0.0
        %507 = vmatmul.mubr.f32.gmra.mrb[0].mxu0 %v411
        %v508 = vpop.f32.mrb[0].mxu0
        %v509 = vadd.f32 %v435, %v508
        %v510 = vpop.f32.mrb[0].mxu0
        %511 = vmatprep.mubr.f32.mxu0 0.0
        %512 = vmatmul.mubr.f32.gmra.mrb[0].mxu0 %v412
        %v513 = vpop.f32.mrb[0].mxu0
        %v514 = vadd.f32 %v435, %v513
        %v515 = vpop.f32.mrb[0].mxu0
        %516 = vmatprep.mubr.f32.mxu0 0.0
        %517 = vmatmul.mubr.f32.gmra.mrb[0].mxu0 %v413
        %v518 = vpop.f32.mrb[0].mxu0
        %v519 = vadd.f32 %v435, %v518
        %v520 = vpop.f32.mrb[0].mxu0
        %521 = vdwg.mxu0
        %v522 = vtanh.pop %v504
        %v523 = vtanh.pop %v509
        %v524 = vtanh.pop %v514
        %v525 = vtanh.pop %v519
        %v526 = vld [vmem:[%s5] sm:$0xff]
        %v527 = vld [vmem:[%s5 + $0x8] sm:$0xff]
        %v528 = vld [vmem:[%s5 + $0x10] sm:$0xff]
        %v529 = vld [vmem:[%s5 + $0x18] sm:$0xff]
        %v530 = vld [vmem:[%s5 + $0x20] sm:$0xff]
        %v531 = vld [vmem:[%s5 + $0x28] sm:$0xff]
        %v532 = vld [vmem:[%s5 + $0x30] sm:$0xff]
        %v533 = vld [vmem:[%s5 + $0x38] sm:$0xff]
        %v534 = vld [vmem:[%s5 + $0x40] sm:$0xff]
        %v535 = vld [vmem:[%s5 + $0x48] sm:$0xff]
        %v536 = vld [vmem:[%s5 + $0x50] sm:$0xff]
        %v537 = vld [vmem:[%s5 + $0x58] sm:$0xff]
        %v538 = vld [vmem:[%s5 + $0x60] sm:$0xff]
        %v539 = vld [vmem:[%s5 + $0x68] sm:$0xff]
        %v540 = vld [vmem:[%s5 + $0x70] sm:$0xff]
        %v541 = vld [vmem:[%s5 + $0x78] sm:$0xff]
        %v542 = vld [vmem:[%s6] sm:$0x1]
        %v544 = vlaneseq
        %v545 = vshrl.u32 %v544, 7
        %v546 = vsub.s32 0, %v545
        %v547 = vrot.slane %v542, %v546
        %549 = vmatprep.subr.mxu0 0.0
        %550 = vmatpush1.msra.mxu0 %v526
        %551 = vmatprep.subr.mxu0 0.0
        %552 = vmatpush1.msra.mxu0 %v527
        %553 = vmatprep.subr.mxu0 0.0
        %554 = vmatpush1.msra.mxu0 %v528
        %555 = vmatprep.subr.mxu0 0.0
        %556 = vmatpush1.msra.mxu0 %v529
        %557 = vmatprep.subr.mxu0 0.0
        %558 = vmatpush1.msra.mxu0 %v530
        %559 = vmatprep.subr.mxu0 0.0
        %560 = vmatpush1.msra.mxu0 %v531
        %561 = vmatprep.subr.mxu0 0.0
        %562 = vmatpush1.msra.mxu0 %v532
        %563 = vmatprep.subr.mxu0 0.0
        %564 = vmatpush1.msra.mxu0 %v533
        %565 = vmatprep.subr.mxu0 0.0
        %566 = vmatpush1.msra.mxu0 %v534
        %567 = vmatprep.subr.mxu0 0.0
        %568 = vmatpush1.msra.mxu0 %v535
        %569 = vmatprep.subr.mxu0 0.0
        %570 = vmatpush1.msra.mxu0 %v536
        %571 = vmatprep.subr.mxu0 0.0
        %572 = vmatpush1.msra.mxu0 %v537
        %573 = vmatprep.subr.mxu0 0.0
        %574 = vmatpush1.msra.mxu0 %v538
        %575 = vmatprep.subr.mxu0 0.0
        %576 = vmatpush1.msra.mxu0 %v539
        %577 = vmatprep.subr.mxu0 0.0
        %578 = vmatpush1.msra.mxu0 %v540
        %579 = vmatprep.subr.mxu0 0.0
        %580 = vmatpush1.msra.mxu0 %v541
        %581 = vmatprep.subr.mxu0 0.0
        %582 = vmatpush1.msra.mxu0 0.0
        %583 = vmatprep.subr.mxu0 0.0
        %584 = vmatpush1.msra.mxu0 0.0
        %585 = vmatprep.subr.mxu0 0.0
        %586 = vmatpush1.msra.mxu0 0.0
        %587 = vmatprep.subr.mxu0 0.0
        %588 = vmatpush1.msra.mxu0 0.0
        %589 = vmatprep.subr.mxu0 0.0
        %590 = vmatpush1.msra.mxu0 0.0
        %591 = vmatprep.subr.mxu0 0.0
        %592 = vmatpush1.msra.mxu0 0.0
        %593 = vmatprep.subr.mxu0 0.0
        %594 = vmatpush1.msra.mxu0 0.0
        %595 = vmatprep.subr.mxu0 0.0
        %596 = vmatpush1.msra.mxu0 0.0
        %597 = vmatprep.subr.mxu0 0.0
        %598 = vmatpush1.msra.mxu0 0.0
        %599 = vmatprep.subr.mxu0 0.0
        %600 = vmatpush1.msra.mxu0 0.0
        %601 = vmatprep.subr.mxu0 0.0
        %602 = vmatpush1.msra.mxu0 0.0
        %603 = vmatprep.subr.mxu0 0.0
        %604 = vmatpush1.msra.mxu0 0.0
        %605 = vmatprep.subr.mxu0 0.0
        %606 = vmatpush1.msra.mxu0 0.0
        %607 = vmatprep.subr.mxu0 0.0
        %608 = vmatpush1.msra.mxu0 0.0
        %609 = vmatprep.subr.mxu0 0.0
        %610 = vmatpush1.msra.mxu0 0.0
        %611 = vmatprep.subr.mxu0 0.0
        %612 = vmatpush1.msra.mxu0 0.0
        %613 = vmatprep.mubr.f32.mxu0 0.0
        %614 = vmatmul.mubr.f32.gmra.mrb[0].mxu0 %v522
        %v615 = vpop.f32.mrb[0].mxu0
        %v616 = vadd.f32 %v547, %v615
        %v617 = vpop.f32.mrb[0].mxu0
        %618 = vmatprep.mubr.f32.mxu0 0.0
        %619 = vmatmul.mubr.f32.gmra.mrb[0].mxu0 %v523
        %v620 = vpop.f32.mrb[0].mxu0
        %v621 = vadd.f32 %v547, %v620
        %v622 = vpop.f32.mrb[0].mxu0
        %623 = vmatprep.mubr.f32.mxu0 0.0
        %624 = vmatmul.mubr.f32.gmra.mrb[0].mxu0 %v524
        %v625 = vpop.f32.mrb[0].mxu0
        %v626 = vadd.f32 %v547, %v625
        %v627 = vpop.f32.mrb[0].mxu0
        %628 = vmatprep.mubr.f32.mxu0 0.0
        %629 = vmatmul.mubr.f32.gmra.mrb[0].mxu0 %v525
        %v630 = vpop.f32.mrb[0].mxu0
        %v631 = vadd.f32 %v547, %v630
        %v632 = vpop.f32.mrb[0].mxu0
        %633 = vdwg.mxu0
        %vm634 = vcmask 130048
        %635 = vst.msk [vmem:[%s295] sm:$0xff] %vm634, %v616
        %636 = vst.msk [vmem:[%s295 + $0x8] sm:$0xff] %vm634, %v621
        %637 = vst.msk [vmem:[%s295 + $0x10] sm:$0xff] %vm634, %v626
        %638 = vst.msk [vmem:[%s295 + $0x18] sm:$0xff] %vm634, %v631
        %s639 = smul.u32 4, %s19
        %p640 = scmp.lt.s32.totalorder %s639, 7
        %s641 = scalar_select %p640, %s639, 7
        %s642 = smul.addr %s641, 8
        %s643 = scalar_lea.vmem %s7, %s642
        // Predicated region
        $region53: #{forward.1} parent=47 // pred_check
          %p644 = pneg %p189
        $region54: #{forward.1} parent=47 // pred_check_branch
          %646 = sbr.rel (%p644) target = $region56
        $region55: #{forward.1} parent=47 // pred_region
          %s647 = smul.u32 4, %s19
        $region56: #{forward.1} parent=47 // pred_fallthru
          _
      $region48: #{forward.1} parent=5 // pred_fallthru
        _
      %p648 = scmp.le.s32.totalorder 2, %s14
      // Predicated region
      $region57: #{forward.1} parent=5 // pred_check
        %p649 = pneg %p648
      $region58: #{forward.1} parent=5 // pred_check_branch
        %651 = sbr.rel (%p649) target = $region60
      $region59: #{forward.1} parent=5 // pred_region
        %s652 = ssub.s32 %s14, 2
        // Predicated region
        $region61: #{forward.1} parent=59 // pred_check
          %p653 = pneg %p195
        $region62: #{forward.1} parent=59 // pred_check_branch
          %655 = sbr.rel (%p653) target = $region64
        $region63: #{forward.1} parent=59 // pred_region
          %s656 = smul.u32 4, %s20
          %p657 = scmp.lt.s32.totalorder %s656, 7
          %s658 = scalar_select %p657, %s656, 7
          %s659 = smul.addr %s658, 8
          %s660 = scalar_lea.vmem %s7, %s659
        $region64: #{forward.1} parent=59 // pred_fallthru
          _
      $region60: #{forward.1} parent=5 // pred_fallthru
        _
    $region6: #{forward.1} parent=1 // loop_footer
      %s18 = sadd.s32 1, %s14
    $region7: #{forward.1} parent=1 // loop_footer_branch
      %13 = sbr.rel target = $region3
    $region8: #{forward.1} parent=1 // loop_exit
      _
    %661 = vsyncpa [#allocation3], 1
    %s662 = scalar_lea.sflag [#allocation3], 1
    %663 = vsyncpa %s662, 1

</llo_original>
